<compile_context>
chip_gen: v5e
topology: v5e:2x2
jax: 0.10.0
libtpu: 0.0.40
codegen_flags: <defaults>
</compile_context>

<pallas_src>
import functools

import jax
import jax.numpy as jnp
from jax.experimental import pallas as pl
from jax.experimental.pallas import tpu as pltpu

LEAKY_SLOPE = 0.1
BN_EPS = 1e-5

_PARAMS = pltpu.CompilerParams(dimension_semantics=("parallel",))


# ----------------------------------------------------------------------------
# Pallas kernels
# ----------------------------------------------------------------------------
def _bn_lrelu_kernel(x_ref, scale_ref, bias_ref, o_ref):
    # x_ref: (1, H, W, C); scale/bias: (1, C) fp32
    x = x_ref[0].astype(jnp.float32)
    y = x * scale_ref[0] + bias_ref[0]
    o_ref[0] = jnp.where(y >= 0, y, LEAKY_SLOPE * y).astype(o_ref.dtype)


def _conv3x3_bn_act_kernel(x_ref, w_ref, s_ref, b_ref, o_ref, *, stride, Ho, Wo):
    """3x3 conv (in-kernel im2col, 9 accumulating dots) + fused BN affine + LeakyReLU.

    x_ref: (1, P, Hp, Wp, Cin) padded input; stride=1 -> P=1, Hp=Ho+2; stride=2 -> P=4
           even/odd phases of the padded input, Hp=Ho+1.
    w_ref: (9, Cin, Cout) taps ordered (kh, kw).
    s_ref/b_ref: (1, Cout) fp32 folded bn2 scale/bias (applied per output lane).
    """
    cout = w_ref.shape[-1]
    acc = jnp.zeros((Ho * Wo, cout), jnp.float32)
    for t in range(9):
        kh, kw = divmod(t, 3)
        if stride == 1:
            win = x_ref[0, 0, kh:kh + Ho, kw:kw + Wo, :]
        else:  # stride == 2: tap (kh, kw) lives in phase (kh%2, kw%2)
            p = (kh % 2) * 2 + (kw % 2)
            win = x_ref[0, p, (kh // 2):(kh // 2) + Ho, (kw // 2):(kw // 2) + Wo, :]
        acc = acc + jnp.dot(win.reshape(Ho * Wo, -1), w_ref[t],
                            preferred_element_type=jnp.float32)
    y = acc * s_ref[0] + b_ref[0]
    y = jnp.where(y >= 0, y, LEAKY_SLOPE * y)
    o_ref[0] = y.reshape(Ho, Wo, cout).astype(o_ref.dtype)


def _conv3x3_res_kernel(*refs, Ho, Wo, use_shortcut, emit_act):
    """conv2 (stride 1, in-kernel im2col) + residual add (+ in-kernel 1x1 shortcut GEMM)
    (+ optional fused next-block bn1+LeakyReLU second output).

    Ref order: x_pad, w, residual, [w_shortcut], [next_scale, next_bias],
               out_sum, [out_act]
    """
    idx = 0
    x_ref = refs[idx]; idx += 1      # (1, Ho+2, Wo+2, Cmid)
    w_ref = refs[idx]; idx += 1      # (9, Cmid, Cout)
    r_ref = refs[idx]; idx += 1      # (1, Ho, Wo, Cr)
    wsc_ref = None
    if use_shortcut:
        wsc_ref = refs[idx]; idx += 1  # (Cr, Cout)
    if emit_act:
        ns_ref = refs[idx]; idx += 1   # (1, Cout) fp32
        nb_ref = refs[idx]; idx += 1   # (1, Cout) fp32
    o_sum_ref = refs[idx]; idx += 1
    if emit_act:
        o_act_ref = refs[idx]; idx += 1

    cout = w_ref.shape[-1]
    acc = jnp.zeros((Ho * Wo, cout), jnp.float32)
    for t in range(9):
        kh, kw = divmod(t, 3)
        win = x_ref[0, kh:kh + Ho, kw:kw + Wo, :].reshape(Ho * Wo, -1)
        acc = acc + jnp.dot(win, w_ref[t], preferred_element_type=jnp.float32)

    r = r_ref[0].reshape(Ho * Wo, -1)
    if use_shortcut:
        acc = acc + jnp.dot(r, wsc_ref[...], preferred_element_type=jnp.float32)
    else:
        acc = acc + r.astype(jnp.float32)

    o_sum_ref[0] = acc.reshape(Ho, Wo, cout).astype(o_sum_ref.dtype)
    if emit_act:
        y = acc * ns_ref[0] + nb_ref[0]
        y = jnp.where(y >= 0, y, LEAKY_SLOPE * y)
        o_act_ref[0] = y.reshape(Ho, Wo, cout).astype(o_act_ref.dtype)


# ----------------------------------------------------------------------------
# Pallas wrappers
# ----------------------------------------------------------------------------
def bn_leaky_relu(x, scale, bias):
    """Fused (eval-mode) BatchNorm affine + LeakyReLU(0.1). x: (N, H, W, C)."""
    N, H, W, C = x.shape
    s2 = scale.reshape(1, C).astype(jnp.float32)
    b2 = bias.reshape(1, C).astype(jnp.float32)
    return pl.pallas_call(
        _bn_lrelu_kernel,
        out_shape=jax.ShapeDtypeStruct((N, H, W, C), x.dtype),
        grid=(N,),
        in_specs=[
            pl.BlockSpec((1, H, W, C), lambda n: (n, 0, 0, 0)),
            pl.BlockSpec((1, C), lambda n: (0, 0)),
            pl.BlockSpec((1, C), lambda n: (0, 0)),
        ],
        out_specs=pl.BlockSpec((1, H, W, C), lambda n: (n, 0, 0, 0)),
        compiler_params=_PARAMS,
    )(x, s2, b2)


def _pad_hw(x):
    return jnp.pad(x, ((0, 0), (1, 1), (1, 1), (0, 0)))


def conv3x3_bn_act(x, w_hwio, bn_scale, bn_bias, stride=1, dtype=jnp.float32):
    """y = LeakyReLU(bn_scale * conv3x3(x, w, stride, pad=1) + bn_bias).

    x: (N, H, W, Cin), w_hwio: (3, 3, Cin, Cout). Stride in {1, 2}.
    """
    N, H, W, Cin = x.shape
    assert stride in (1, 2)
    assert H % stride == 0 and W % stride == 0
    Ho, Wo = H // stride, W // stride
    Cout = w_hwio.shape[-1]

    xp = _pad_hw(x)
    if stride == 1:
        xph = xp[:, None]                                   # (N, 1, H+2, W+2, Cin)
    else:
        # even/odd phase split so every tap is a contiguous slice in-kernel
        xph = jnp.stack([xp[:, a::2, b::2, :] for a in range(2) for b in range(2)],
                        axis=1)                             # (N, 4, Ho+1, Wo+1, Cin)
    xph = xph.astype(dtype)
    P, Hp, Wp = xph.shape[1], xph.shape[2], xph.shape[3]

    w9 = w_hwio.reshape(9, Cin, Cout).astype(dtype)
    s2 = bn_scale.reshape(1, Cout).astype(jnp.float32)
    b2 = bn_bias.reshape(1, Cout).astype(jnp.float32)

    kernel = functools.partial(_conv3x3_bn_act_kernel, stride=stride, Ho=Ho, Wo=Wo)
    return pl.pallas_call(
        kernel,
        out_shape=jax.ShapeDtypeStruct((N, Ho, Wo, Cout), dtype),
        grid=(N,),
        in_specs=[
            pl.BlockSpec((1, P, Hp, Wp, Cin), lambda n: (n, 0, 0, 0, 0)),
            pl.BlockSpec((9, Cin, Cout), lambda n: (0, 0, 0)),
            pl.BlockSpec((1, Cout), lambda n: (0, 0)),
            pl.BlockSpec((1, Cout), lambda n: (0, 0)),
        ],
        out_specs=pl.BlockSpec((1, Ho, Wo, Cout), lambda n: (n, 0, 0, 0)),
        compiler_params=_PARAMS,
    )(xph, w9, s2, b2)


def conv3x3_residual(x, w_hwio, residual, shortcut_w=None,
                     next_scale=None, next_bias=None, dtype=jnp.float32):
    """out_sum = conv3x3(x, w, stride=1, pad=1) + residual  (residual either added
    directly, or produced in-kernel via a 1x1 shortcut GEMM when shortcut_w is given).
    If next_scale/bias are given, also returns LeakyReLU(next_scale*out_sum+next_bias).
    Returns a list: [out_sum] or [out_sum, out_act].
    """
    N, Ho, Wo, Cmid = x.shape
    Cout = w_hwio.shape[-1]
    Cr = residual.shape[-1]
    use_shortcut = shortcut_w is not None
    emit_act = next_scale is not None

    xp = _pad_hw(x).astype(dtype)                        # (N, Ho+2, Wo+2, Cmid)
    w9 = w_hwio.reshape(9, Cmid, Cout).astype(dtype)

    inputs = [xp, w9, residual.astype(dtype)]
    in_specs = [
        pl.BlockSpec((1, Ho + 2, Wo + 2, Cmid), lambda n: (n, 0, 0, 0)),
        pl.BlockSpec((9, Cmid, Cout), lambda n: (0, 0, 0)),
        pl.BlockSpec((1, Ho, Wo, Cr), lambda n: (n, 0, 0, 0)),
    ]
    if use_shortcut:
        inputs.append(shortcut_w.reshape(Cr, Cout).astype(dtype))
        in_specs.append(pl.BlockSpec((Cr, Cout), lambda n: (0, 0)))
    if emit_act:
        inputs.append(next_scale.reshape(1, Cout).astype(jnp.float32))
        inputs.append(next_bias.reshape(1, Cout).astype(jnp.float32))
        in_specs.append(pl.BlockSpec((1, Cout), lambda n: (0, 0)))
        in_specs.append(pl.BlockSpec((1, Cout), lambda n: (0, 0)))

    out_shapes = [jax.ShapeDtypeStruct((N, Ho, Wo, Cout), dtype)]
    out_specs = [pl.BlockSpec((1, Ho, Wo, Cout), lambda n: (n, 0, 0, 0))]
    if emit_act:
        out_shapes.append(jax.ShapeDtypeStruct((N, Ho, Wo, Cout), dtype))
        out_specs.append(pl.BlockSpec((1, Ho, Wo, Cout), lambda n: (n, 0, 0, 0)))

    kernel = functools.partial(_conv3x3_res_kernel, Ho=Ho, Wo=Wo,
                               use_shortcut=use_shortcut, emit_act=emit_act)
    return pl.pallas_call(
        kernel,
        out_shape=out_shapes,
        grid=(N,),
        in_specs=in_specs,
        out_specs=out_specs,
        compiler_params=_PARAMS,
    )(*inputs)


# ----------------------------------------------------------------------------
# BasicBlock / NetworkBlock forward (glue around Pallas kernels)
# ----------------------------------------------------------------------------
def network_block_forward_nchw(x_nchw, layer_params, stride,
                               activate_before_residual=False,
                               dtype=jnp.float32):
    """Mirrors NetworkBlock.forward. Input/output are NCHW like PyTorch."""
    x = jnp.transpose(x_nchw, (0, 2, 3, 1)).astype(dtype)   # NCHW -> NHWC
    n_layers = len(layer_params)
    act1 = None  # lrelu(bn1_i(x_i)); produced by previous block's fused epilogue when possible
    for i, p in enumerate(layer_params):
        st = stride if i == 0 else 1
        equal = p["shortcut_w"] is None

        if act1 is None and (equal or activate_before_residual):
            act1 = bn_leaky_relu(x, p["bn1_scale"], p["bn1_bias"])

        if equal:
            conv1_in, short_in, w_sc = act1, x, None
        elif activate_before_residual:
            conv1_in, short_in, w_sc = act1, act1, p["shortcut_w"]
        else:
            # torch computes relu(bn1(x)) here but never uses it -> safe to skip.
            conv1_in, short_in, w_sc = x, x, p["shortcut_w"]

        # conv1 (stride st) with fused bn2 + LeakyReLU epilogue
        act2 = conv3x3_bn_act(conv1_in, p["conv1_w"], p["bn2_scale"], p["bn2_bias"],
                              stride=st, dtype=dtype)
        # TODO(synk): F.dropout between bn2/relu and conv2 is not implemented (drop_rate=0.0).

        # conv2 + residual (1x1 shortcut GEMM in-kernel when needed)
        # + fused bn1/LeakyReLU of the NEXT block as a second output.
        res_in = short_in if equal else short_in[:, ::st, ::st, :]
        nxt = layer_params[i + 1] if i + 1 < n_layers else None
        outs = conv3x3_residual(
            act2, p["conv2_w"], res_in, shortcut_w=w_sc,
            next_scale=None if nxt is None else nxt["bn1_scale"],
            next_bias=None if nxt is None else nxt["bn1_bias"],
            dtype=dtype)
        if nxt is None:
            x, act1 = outs[0], None
        else:
            x, act1 = outs[0], outs[1]
    return jnp.transpose(x, (0, 3, 1, 2)).astype(jnp.float32)   # NHWC -> NCHW


# ----------------------------------------------------------------------------
# Deterministic parameter initialization (synthetic, not a checkpoint)
# ----------------------------------------------------------------------------
def _init_bn(key, c):
    k0, k1, k2, k3 = jax.random.split(key, 4)
    gamma = 1.0 + 0.1 * jax.random.normal(k0, (c,), jnp.float32)
    beta = 0.1 * jax.random.normal(k1, (c,), jnp.float32)
    mean = 0.05 * jax.random.normal(k2, (c,), jnp.float32)
    var = jnp.abs(1.0 + 0.1 * jax.random.normal(k3, (c,), jnp.float32))
    scale = gamma / jnp.sqrt(var + BN_EPS)
    bias = beta - mean * scale
    return scale, bias


def _init_conv(key, kh, kw, cin, cout):
    fan_in = kh * kw * cin
    return jax.random.normal(key, (kh, kw, cin, cout), jnp.float32) / jnp.sqrt(fan_in)


def init_network_block_params(key, nb_layers, in_planes, out_planes):
    layers = []
    for i in range(int(nb_layers)):
        cin = in_planes if i == 0 else out_planes
        key, k_bn1, k_bn2, k_c1, k_c2, k_sc = jax.random.split(key, 6)
        bn1_s, bn1_b = _init_bn(k_bn1, cin)
        bn2_s, bn2_b = _init_bn(k_bn2, out_planes)
        p = {
            "bn1_scale": bn1_s, "bn1_bias": bn1_b,
            "bn2_scale": bn2_s, "bn2_bias": bn2_b,
            "conv1_w": _init_conv(k_c1, 3, 3, cin, out_planes),
            "conv2_w": _init_conv(k_c2, 3, 3, out_planes, out_planes),
            "shortcut_w": (None if cin == out_planes
                           else _init_conv(k_sc, 1, 1, cin, out_planes)),
        }
        layers.append(p)
    return layers


# ----------------------------------------------------------------------------
# Pure-JAX reference (for correctness check only)
# ----------------------------------------------------------------------------
def _ref_conv(x, w, stride, pad):
    return jax.lax.conv_general_dilated(
        x, w, (stride, stride), [(pad, pad), (pad, pad)],
        dimension_numbers=("NHWC", "HWIO", "NHWC"))


def _ref_bn_lrelu(x, s, b):
    y = x * s + b
    return jnp.where(y >= 0, y, LEAKY_SLOPE * y)


def ref_network_block_nchw(x_nchw, layer_params, stride, activate_before_residual):
    x = jnp.transpose(x_nchw, (0, 2, 3, 1))
    for i, p in enumerate(layer_params):
        st = stride if i == 0 else 1
        equal = p["shortcut_w"] is None
        if (not equal) and activate_before_residual:
            x = _ref_bn_lrelu(x, p["bn1_scale"], p["bn1_bias"])
            conv1_in = x
            short_in = x
        else:
            out = _ref_bn_lrelu(x, p["bn1_scale"], p["bn1_bias"])
            conv1_in = out if equal else x
            short_in = x
        out = _ref_conv(conv1_in, p["conv1_w"], st, 1)
        out = _ref_bn_lrelu(out, p["bn2_scale"], p["bn2_bias"])
        out = _ref_conv(out, p["conv2_w"], 1, 1)
        res = short_in if equal else _ref_conv(short_in, p["shortcut_w"], st, 0)
        x = out + res
    return jnp.transpose(x, (0, 3, 1, 2))


# ----------------------------------------------------------------------------
if __name__ == "__main__":
    key = jax.random.PRNGKey(0)
    k_x, k_p = jax.random.split(key)

    # NetworkBlock(nb_layers=2, in_planes=4, out_planes=8, block=BasicBlock,
    #              stride=2, drop_rate=0.0, activate_before_residual=True)
    nb_layers, in_planes, out_planes, stride = 2, 4, 8, 2
    activate_before_residual = True

    x = jax.random.normal(k_x, (2, in_planes, 16, 16), jnp.float32)  # NCHW
    params = init_network_block_params(k_p, nb_layers, in_planes, out_planes)

    ref = ref_network_block_nchw(x, params, stride, activate_before_residual)

    # fp32 run: strict check against the pure-JAX reference.
    out = network_block_forward_nchw(x, params, stride, activate_before_residual,
                                     dtype=jnp.float32)
    out = jax.block_until_ready(out)
    assert out.shape == (2, out_planes, 8, 8), out.shape
    err_f32 = float(jnp.max(jnp.abs(out - ref)))
    assert err_f32 < 1e-3, f"fp32 mismatch vs reference: {err_f32}"

    # bf16-GEMM run (fp32 accumulation/epilogue): looser tolerance due to bf16 storage.
    out_bf16 = network_block_forward_nchw(x, params, stride, activate_before_residual,
                                          dtype=jnp.bfloat16)
    out_bf16 = jax.block_until_ready(out_bf16)
    err_bf16 = float(jnp.max(jnp.abs(out_bf16 - ref)))
    assert err_bf16 < 1e-1, f"bf16 mismatch vs reference: {err_bf16}"

    print("KERNEL_OK")
</pallas_src>

<mosaic_0001>
module attributes {stable_mosaic.version = 11 : i64} {
  func.func @_bn_lrelu_kernel(%arg0: i32, %arg1: memref<1x16x16x4xf32, #tpu.memory_space<vmem>>, %arg2: memref<1x4xf32, #tpu.memory_space<vmem>>, %arg3: memref<1x4xf32, #tpu.memory_space<vmem>>, %arg4: memref<1x16x16x4xf32, #tpu.memory_space<vmem>>) attributes {dimension_semantics = [#tpu.dimension_semantics<parallel>], iteration_bounds = array<i64: 2>, scalar_prefetch = 0 : i64, scratch_operands = 0 : i64, tpu.core_type = #tpu.core_type<tc>, window_params = [{transform_indices = @transform_0, window_bounds = array<i64: 1, 16, 16, 4>}, {pipeline_mode = #tpu.pipeline_mode<synchronous>, transform_indices = @transform_1, window_bounds = array<i64: 1, 4>}, {pipeline_mode = #tpu.pipeline_mode<synchronous>, transform_indices = @transform_2, window_bounds = array<i64: 1, 4>}, {transform_indices = @transform_3, window_bounds = array<i64: 1, 16, 16, 4>}]} {
    %c0 = arith.constant 0 : index
    %c0_0 = arith.constant 0 : index
    %c0_1 = arith.constant 0 : index
    %c0_2 = arith.constant 0 : index
    %0 = vector.load %arg1[%c0, %c0_0, %c0_1, %c0_2] : memref<1x16x16x4xf32, #tpu.memory_space<vmem>>, vector<1x16x16x4xf32>
    %1 = vector.shape_cast %0 : vector<1x16x16x4xf32> to vector<16x16x4xf32>
    %c0_3 = arith.constant 0 : index
    %c0_4 = arith.constant 0 : index
    %2 = vector.load %arg2[%c0_3, %c0_4] : memref<1x4xf32, #tpu.memory_space<vmem>>, vector<1x4xf32>
    %3 = vector.shape_cast %2 : vector<1x4xf32> to vector<4xf32>
    %4 = vector.shape_cast %3 : vector<4xf32> to vector<1x1x4xf32>
    %5 = vector.broadcast %4 : vector<1x1x4xf32> to vector<16x16x4xf32>
    %6 = arith.mulf %1, %5 : vector<16x16x4xf32>
    %c0_5 = arith.constant 0 : index
    %c0_6 = arith.constant 0 : index
    %7 = vector.load %arg3[%c0_5, %c0_6] : memref<1x4xf32, #tpu.memory_space<vmem>>, vector<1x4xf32>
    %8 = vector.shape_cast %7 : vector<1x4xf32> to vector<4xf32>
    %9 = vector.shape_cast %8 : vector<4xf32> to vector<1x1x4xf32>
    %10 = vector.broadcast %9 : vector<1x1x4xf32> to vector<16x16x4xf32>
    %11 = arith.addf %6, %10 : vector<16x16x4xf32>
    %cst = arith.constant 0.000000e+00 : f32
    %12 = vector.broadcast %cst : f32 to vector<16x16x4xf32>
    %13 = arith.cmpf oge, %11, %12 : vector<16x16x4xf32>
    %cst_7 = arith.constant 1.000000e-01 : f32
    %14 = vector.broadcast %cst_7 : f32 to vector<16x16x4xf32>
    %15 = arith.mulf %14, %11 : vector<16x16x4xf32>
    %16 = arith.select %13, %11, %15 : vector<16x16x4xi1>, vector<16x16x4xf32>
    %c0_8 = arith.constant 0 : index
    %c0_9 = arith.constant 0 : index
    %c0_10 = arith.constant 0 : index
    %c0_11 = arith.constant 0 : index
    %17 = vector.load %arg4[%c0_8, %c0_9, %c0_10, %c0_11] : memref<1x16x16x4xf32, #tpu.memory_space<vmem>>, vector<1x16x16x4xf32>
    %18 = vector.shape_cast %17 : vector<1x16x16x4xf32> to vector<16x16x4xf32>
    %19 = vector.shape_cast %16 : vector<16x16x4xf32> to vector<1x16x16x4xf32>
    tpu.vector_store %arg4[%c0_8, %c0_9, %c0_10, %c0_11], %19 {strides = array<i32>} : memref<1x16x16x4xf32, #tpu.memory_space<vmem>>, vector<1x16x16x4xf32>,
    return
  }
  func.func @transform_0(%arg0: i32) -> (i32, i32, i32, i32) {
    %c0_i32 = arith.constant 0 : i32
    %c0_i32_0 = arith.constant 0 : i32
    %c0_i32_1 = arith.constant 0 : i32
    %c0_i32_2 = arith.constant 0 : i32
    return %arg0, %c0_i32, %c0_i32_0, %c0_i32_1 : i32, i32, i32, i32
  }
  func.func @transform_1(%arg0: i32) -> (i32, i32) {
    %c0_i32 = arith.constant 0 : i32
    %c0_i32_0 = arith.constant 0 : i32
    %c0_i32_1 = arith.constant 0 : i32
    return %c0_i32, %c0_i32_0 : i32, i32
  }
  func.func @transform_2(%arg0: i32) -> (i32, i32) {
    %c0_i32 = arith.constant 0 : i32
    %c0_i32_0 = arith.constant 0 : i32
    %c0_i32_1 = arith.constant 0 : i32
    return %c0_i32, %c0_i32_0 : i32, i32
  }
  func.func @transform_3(%arg0: i32) -> (i32, i32, i32, i32) {
    %c0_i32 = arith.constant 0 : i32
    %c0_i32_0 = arith.constant 0 : i32
    %c0_i32_1 = arith.constant 0 : i32
    %c0_i32_2 = arith.constant 0 : i32
    return %arg0, %c0_i32, %c0_i32_0, %c0_i32_1 : i32, i32, i32, i32
  }
}

</mosaic_0001>

<llo_original>
// kernel: tpu_custom_call.1
$region0: #{tpu_custom_call.1}
  #allocation0 [shape = 'u32[]', space=smem, size = 0x4, offset = 0x4, fixed_abs, tag = 'smem constant byte address 0x4 - core index']
  #allocation1 [shape = 'u32[72,128]{1,0:T(1,128)}', space=vmem, size = 0x9000, scoped, tag = 'internal scratch']
  %s0 = inlined_call_operand.vmem [shape: f32[2,16,16,4], index: 0, kind: input, shape index: {}]
  %s1 = inlined_call_operand.vmem [shape: f32[1,4], index: 1, kind: input, shape index: {}]
  %s2 = inlined_call_operand.vmem [shape: f32[1,4], index: 2, kind: input, shape index: {}]
  %s3 = inlined_call_operand.vmem [shape: f32[2,16,16,4], index: 3, kind: output, shape index: {}]
  %s4 = sld [smem:[#allocation0]]
  $region45: #{tpu_custom_call.1} parent=0
    _
  %s6 = ssub.s32 1, %s4
  %s7 = scalar_select 0, %s6, %s4
  loop: start=0, step=1, limit=4
  $region2: #{tpu_custom_call.1} parent=0 // loop_pre_header
    _
  $region3: #{tpu_custom_call.1} parent=0 // loop_header
    %s9 = sphi 0, %s13
    %p10 = scmp.ge.s32.totalorder %s9, 4
    %s19 = sphi 0, %s21
    %s22 = sphi 0, %s19
    %s23 = sphi 0, %s22
    %s39 = sphi 0, %s23
    %s43 = sphi 0, %s43
    %s45 = sphi 0, %s43
    %s46 = sphi 0, %s45
    %s60 = sphi 0, %s46
    %s64 = sphi 0, %s64
    %s66 = sphi 0, %s64
    %s67 = sphi 0, %s66
    %s81 = sphi 0, %s67
    %s87 = sphi 0, %s89
    %s90 = sphi 0, %s87
    %s91 = sphi 0, %s90
    %s107 = sphi 0, %s91
  $region4: #{tpu_custom_call.1} parent=0 // loop_header_branch
    %12 = sbr.rel (%p10) target = $region8
  $region5: #{tpu_custom_call.1} parent=0 // loop_body
    %s14 = ssub.s32 %s9, 1
    %s15 = ssub.s32 %s9, 2
    %s16 = sadd.s32 %s9, 1
    %s17 = ssub.s32 %s9, %s16
    %p18 = scmp.eq.s32.totalorder %s17, 0
    %s20 = sadd.s32 %s19, 1
    %s21 = scalar_select %p18, %s19, %s20
    %p24 = pneg %p18
    %p25 = scmp.eq.s32.totalorder %s9, 1
    %p26 = por %p24, %p25
    %p27 = scmp.ne.s32.totalorder %s19, %s22
    %p28 = scmp.eq.s32.totalorder %s9, 0
    %p29 = por %p27, %p28
    %p30 = scmp.ne.s32.totalorder %s19, %s22
    %p31 = scmp.eq.s32.totalorder %s14, 1
    %p32 = por %p30, %p31
    %p33 = scmp.ne.s32.totalorder %s22, %s23
    %p34 = scmp.eq.s32.totalorder %s14, 0
    %p35 = por %p33, %p34
    %p36 = scmp.ne.s32.totalorder %s22, %s23
    %p37 = scmp.eq.s32.totalorder %s15, 1
    %p38 = por %p36, %p37
    %p40 = scmp.ne.s32.totalorder %s23, %s39
    %p41 = scmp.eq.s32.totalorder %s15, 0
    %p42 = por %p40, %p41
    %s44 = sadd.s32 %s43, 1
    %p47 = scmp.eq.s32.totalorder %s9, 1
    %p48 = scmp.ne.s32.totalorder %s43, %s45
    %p49 = scmp.eq.s32.totalorder %s9, 0
    %p50 = por %p48, %p49
    %p51 = scmp.ne.s32.totalorder %s43, %s45
    %p52 = scmp.eq.s32.totalorder %s14, 1
    %p53 = por %p51, %p52
    %p54 = scmp.ne.s32.totalorder %s45, %s46
    %p55 = scmp.eq.s32.totalorder %s14, 0
    %p56 = por %p54, %p55
    %p57 = scmp.ne.s32.totalorder %s45, %s46
    %p58 = scmp.eq.s32.totalorder %s15, 1
    %p59 = por %p57, %p58
    %p61 = scmp.ne.s32.totalorder %s46, %s60
    %p62 = scmp.eq.s32.totalorder %s15, 0
    %p63 = por %p61, %p62
    %s65 = sadd.s32 %s64, 1
    %p68 = scmp.eq.s32.totalorder %s9, 1
    %p69 = scmp.ne.s32.totalorder %s64, %s66
    %p70 = scmp.eq.s32.totalorder %s9, 0
    %p71 = por %p69, %p70
    %p72 = scmp.ne.s32.totalorder %s64, %s66
    %p73 = scmp.eq.s32.totalorder %s14, 1
    %p74 = por %p72, %p73
    %p75 = scmp.ne.s32.totalorder %s66, %s67
    %p76 = scmp.eq.s32.totalorder %s14, 0
    %p77 = por %p75, %p76
    %p78 = scmp.ne.s32.totalorder %s66, %s67
    %p79 = scmp.eq.s32.totalorder %s15, 1
    %p80 = por %p78, %p79
    %p82 = scmp.ne.s32.totalorder %s67, %s81
    %p83 = scmp.eq.s32.totalorder %s15, 0
    %p84 = por %p82, %p83
    %s85 = ssub.s32 %s9, %s16
    %p86 = scmp.eq.s32.totalorder %s85, 0
    %s88 = sadd.s32 %s87, 1
    %s89 = scalar_select %p86, %s87, %s88
    %p92 = pneg %p86
    %p93 = scmp.eq.s32.totalorder %s9, 1
    %p94 = por %p92, %p93
    %p95 = scmp.ne.s32.totalorder %s87, %s90
    %p96 = scmp.eq.s32.totalorder %s9, 0
    %p97 = por %p95, %p96
    %p98 = scmp.ne.s32.totalorder %s87, %s90
    %p99 = scmp.eq.s32.totalorder %s14, 1
    %p100 = por %p98, %p99
    %p101 = scmp.ne.s32.totalorder %s90, %s91
    %p102 = scmp.eq.s32.totalorder %s14, 0
    %p103 = por %p101, %p102
    %p104 = scmp.ne.s32.totalorder %s90, %s91
    %p105 = scmp.eq.s32.totalorder %s15, 1
    %p106 = por %p104, %p105
    %p108 = scmp.ne.s32.totalorder %s91, %s107
    %p109 = scmp.eq.s32.totalorder %s15, 0
    %p110 = por %p108, %p109
    %p111 = scmp.le.s32.totalorder 1, %s9
    %p112 = scmp.lt.s32.totalorder %s9, 3
    %p113 = pnand %p111, %p112
    %p114 = pneg %p113
    // Predicated region
    $region9: #{tpu_custom_call.1} parent=5 // pred_check
      _
    $region10: #{tpu_custom_call.1} parent=5 // pred_check_branch
      %116 = sbr.rel (%p113) target = $region12
    $region11: #{tpu_custom_call.1} parent=5 // pred_region
      %s117 = ssub.s32 %s9, 1
      // Predicated region
      $region13: #{tpu_custom_call.1} parent=11 // pred_check
        %p118 = pneg %p56
      $region14: #{tpu_custom_call.1} parent=11 // pred_check_branch
        %120 = sbr.rel (%p118) target = $region16
      $region15: #{tpu_custom_call.1} parent=11 // pred_region
        _
      $region16: #{tpu_custom_call.1} parent=11 // pred_fallthru
        _
      // Predicated region
      $region17: #{tpu_custom_call.1} parent=11 // pred_check
        %p121 = pneg %p77
      $region18: #{tpu_custom_call.1} parent=11 // pred_check_branch
        %123 = sbr.rel (%p121) target = $region20
      $region19: #{tpu_custom_call.1} parent=11 // pred_region
        _
      $region20: #{tpu_custom_call.1} parent=11 // pred_fallthru
        _
    $region12: #{tpu_custom_call.1} parent=5 // pred_fallthru
      _
    %p124 = scmp.lt.s32.totalorder %s9, 2
    // Predicated region
    $region21: #{tpu_custom_call.1} parent=5 // pred_check
      %p125 = pneg %p124
    $region22: #{tpu_custom_call.1} parent=5 // pred_check_branch
      %127 = sbr.rel (%p125) target = $region24
    $region23: #{tpu_custom_call.1} parent=5 // pred_region
      // Predicated region
      $region25: #{tpu_custom_call.1} parent=23 // pred_check
        %p128 = pneg %p29
      $region26: #{tpu_custom_call.1} parent=23 // pred_check_branch
        %130 = sbr.rel (%p128) target = $region28
      $region27: #{tpu_custom_call.1} parent=23 // pred_region
        %p131 = scmp.lt.s32.totalorder %s9, 1
        %s132 = scalar_select %p131, %s9, 1
        %s133 = smul.addr %s132, 32
        %s134 = smul.addr %s133, 8
        %s135 = scalar_lea.vmem %s0, %s134
      $region28: #{tpu_custom_call.1} parent=23 // pred_fallthru
        _
    $region24: #{tpu_custom_call.1} parent=5 // pred_fallthru
      _
    %p136 = scmp.le.s32.totalorder 1, %s9
    %p137 = scmp.lt.s32.totalorder %s9, 3
    %p138 = pnand %p136, %p137
    %p139 = pneg %p138
    // Predicated region
    $region29: #{tpu_custom_call.1} parent=5 // pred_check
      _
    $region30: #{tpu_custom_call.1} parent=5 // pred_check_branch
      %141 = sbr.rel (%p138) target = $region32
    $region31: #{tpu_custom_call.1} parent=5 // pred_region
      %s142 = ssub.s32 %s9, 1
      %p143 = scmp.lt.s32.totalorder %s14, 1
      %s144 = scalar_select %p143, %s14, 1
      %s145 = smul.addr %s144, 32
      %s146 = smul.addr %s145, 8
      %s147 = scalar_lea.vmem %s0, %s146
      %p148 = pneg %p35
      %p149 = pneg %p32
      %p150 = pneg %p56
      %p151 = pneg %p53
      %p152 = pneg %p77
      %p153 = pneg %p74
      %p154 = pneg %p103
      %p155 = pneg %p100
      %p156 = scmp.lt.s32.totalorder %s14, 1
      %s157 = scalar_select %p156, %s14, 1
      %s158 = smul.addr %s157, 32
      %s159 = smul.addr %s158, 8
      %s160 = scalar_lea.vmem %s3, %s159
      %p161 = scmp.lt.s32.totalorder %s14, 1
      %s162 = scalar_select %p161, %s14, 1
      %s163 = smul.addr %s162, 32
      %s164 = smul.addr %s163, 8
      %s165 = scalar_lea.vmem %s0, %s164
      %p166 = scmp.lt.s32.totalorder %s14, 1
      %s167 = scalar_select %p166, %s14, 1
      %s168 = smul.addr %s167, 32
      %s169 = smul.addr %s168, 8
      %s170 = scalar_lea.vmem %s3, %s169
      %v171 = vld [vmem:[%s165] sm:$0xff]
      %v172 = vld [vmem:[%s165 + $0x8] sm:$0xff]
      %v173 = vld [vmem:[%s165 + $0x10] sm:$0xff]
      %v174 = vld [vmem:[%s165 + $0x18] sm:$0xff]
      %v175 = vld [vmem:[%s165 + $0x20] sm:$0xff]
      %v176 = vld [vmem:[%s165 + $0x28] sm:$0xff]
      %v177 = vld [vmem:[%s165 + $0x30] sm:$0xff]
      %v178 = vld [vmem:[%s165 + $0x38] sm:$0xff]
      %v179 = vld [vmem:[%s165 + $0x40] sm:$0xff]
      %v180 = vld [vmem:[%s165 + $0x48] sm:$0xff]
      %v181 = vld [vmem:[%s165 + $0x50] sm:$0xff]
      %v182 = vld [vmem:[%s165 + $0x58] sm:$0xff]
      %v183 = vld [vmem:[%s165 + $0x60] sm:$0xff]
      %v184 = vld [vmem:[%s165 + $0x68] sm:$0xff]
      %v185 = vld [vmem:[%s165 + $0x70] sm:$0xff]
      %v186 = vld [vmem:[%s165 + $0x78] sm:$0xff]
      %v187 = vld [vmem:[%s165 + $0x80] sm:$0xff]
      %v188 = vld [vmem:[%s165 + $0x88] sm:$0xff]
      %v189 = vld [vmem:[%s165 + $0x90] sm:$0xff]
      %v190 = vld [vmem:[%s165 + $0x98] sm:$0xff]
      %v191 = vld [vmem:[%s165 + $0xa0] sm:$0xff]
      %v192 = vld [vmem:[%s165 + $0xa8] sm:$0xff]
      %v193 = vld [vmem:[%s165 + $0xb0] sm:$0xff]
      %v194 = vld [vmem:[%s165 + $0xb8] sm:$0xff]
      %v195 = vld [vmem:[%s165 + $0xc0] sm:$0xff]
      %v196 = vld [vmem:[%s165 + $0xc8] sm:$0xff]
      %v197 = vld [vmem:[%s165 + $0xd0] sm:$0xff]
      %v198 = vld [vmem:[%s165 + $0xd8] sm:$0xff]
      %v199 = vld [vmem:[%s165 + $0xe0] sm:$0xff]
      %v200 = vld [vmem:[%s165 + $0xe8] sm:$0xff]
      %v201 = vld [vmem:[%s165 + $0xf0] sm:$0xff]
      %v202 = vld [vmem:[%s165 + $0xf8] sm:$0xff]
      %v203 = vld [vmem:[%s1] sm:$0x1]
      %v205 = vperm.slane %v203, 0
      %v207 = vmul.f32 %v171, %v205
      %v208 = vmul.f32 %v172, %v205
      %v209 = vmul.f32 %v173, %v205
      %v210 = vmul.f32 %v174, %v205
      %v211 = vmul.f32 %v175, %v205
      %v212 = vmul.f32 %v176, %v205
      %v213 = vmul.f32 %v177, %v205
      %v214 = vmul.f32 %v178, %v205
      %v215 = vmul.f32 %v179, %v205
      %v216 = vmul.f32 %v180, %v205
      %v217 = vmul.f32 %v181, %v205
      %v218 = vmul.f32 %v182, %v205
      %v219 = vmul.f32 %v183, %v205
      %v220 = vmul.f32 %v184, %v205
      %v221 = vmul.f32 %v185, %v205
      %v222 = vmul.f32 %v186, %v205
      %v223 = vmul.f32 %v187, %v205
      %v224 = vmul.f32 %v188, %v205
      %v225 = vmul.f32 %v189, %v205
      %v226 = vmul.f32 %v190, %v205
      %v227 = vmul.f32 %v191, %v205
      %v228 = vmul.f32 %v192, %v205
      %v229 = vmul.f32 %v193, %v205
      %v230 = vmul.f32 %v194, %v205
      %v231 = vmul.f32 %v195, %v205
      %v232 = vmul.f32 %v196, %v205
      %v233 = vmul.f32 %v197, %v205
      %v234 = vmul.f32 %v198, %v205
      %v235 = vmul.f32 %v199, %v205
      %v236 = vmul.f32 %v200, %v205
      %v237 = vmul.f32 %v201, %v205
      %v238 = vmul.f32 %v202, %v205
      %v239 = vld [vmem:[%s2] sm:$0x1]
      %v241 = vperm.slane %v239, 0
      %v243 = vadd.f32 %v207, %v241
      %v244 = vadd.f32 %v208, %v241
      %v245 = vadd.f32 %v209, %v241
      %v246 = vadd.f32 %v210, %v241
      %v247 = vadd.f32 %v211, %v241
      %v248 = vadd.f32 %v212, %v241
      %v249 = vadd.f32 %v213, %v241
      %v250 = vadd.f32 %v214, %v241
      %v251 = vadd.f32 %v215, %v241
      %v252 = vadd.f32 %v216, %v241
      %v253 = vadd.f32 %v217, %v241
      %v254 = vadd.f32 %v218, %v241
      %v255 = vadd.f32 %v219, %v241
      %v256 = vadd.f32 %v220, %v241
      %v257 = vadd.f32 %v221, %v241
      %v258 = vadd.f32 %v222, %v241
      %v259 = vadd.f32 %v223, %v241
      %v260 = vadd.f32 %v224, %v241
      %v261 = vadd.f32 %v225, %v241
      %v262 = vadd.f32 %v226, %v241
      %v263 = vadd.f32 %v227, %v241
      %v264 = vadd.f32 %v228, %v241
      %v265 = vadd.f32 %v229, %v241
      %v266 = vadd.f32 %v230, %v241
      %v267 = vadd.f32 %v231, %v241
      %v268 = vadd.f32 %v232, %v241
      %v269 = vadd.f32 %v233, %v241
      %v270 = vadd.f32 %v234, %v241
      %v271 = vadd.f32 %v235, %v241
      %v272 = vadd.f32 %v236, %v241
      %v273 = vadd.f32 %v237, %v241
      %v274 = vadd.f32 %v238, %v241
      %vm275 = vcmp.ge.f32.partialorder %v243, 0.0
      %vm276 = vcmp.ge.f32.partialorder %v244, 0.0
      %vm277 = vcmp.ge.f32.partialorder %v245, 0.0
      %vm278 = vcmp.ge.f32.partialorder %v246, 0.0
      %vm279 = vcmp.ge.f32.partialorder %v247, 0.0
      %vm280 = vcmp.ge.f32.partialorder %v248, 0.0
      %vm281 = vcmp.ge.f32.partialorder %v249, 0.0
      %vm282 = vcmp.ge.f32.partialorder %v250, 0.0
      %vm283 = vcmp.ge.f32.partialorder %v251, 0.0
      %vm284 = vcmp.ge.f32.partialorder %v252, 0.0
      %vm285 = vcmp.ge.f32.partialorder %v253, 0.0
      %vm286 = vcmp.ge.f32.partialorder %v254, 0.0
      %vm287 = vcmp.ge.f32.partialorder %v255, 0.0
      %vm288 = vcmp.ge.f32.partialorder %v256, 0.0
      %vm289 = vcmp.ge.f32.partialorder %v257, 0.0
      %vm290 = vcmp.ge.f32.partialorder %v258, 0.0
      %vm291 = vcmp.ge.f32.partialorder %v259, 0.0
      %vm292 = vcmp.ge.f32.partialorder %v260, 0.0
      %vm293 = vcmp.ge.f32.partialorder %v261, 0.0
      %vm294 = vcmp.ge.f32.partialorder %v262, 0.0
      %vm295 = vcmp.ge.f32.partialorder %v263, 0.0
      %vm296 = vcmp.ge.f32.partialorder %v264, 0.0
      %vm297 = vcmp.ge.f32.partialorder %v265, 0.0
      %vm298 = vcmp.ge.f32.partialorder %v266, 0.0
      %vm299 = vcmp.ge.f32.partialorder %v267, 0.0
      %vm300 = vcmp.ge.f32.partialorder %v268, 0.0
      %vm301 = vcmp.ge.f32.partialorder %v269, 0.0
      %vm302 = vcmp.ge.f32.partialorder %v270, 0.0
      %vm303 = vcmp.ge.f32.partialorder %v271, 0.0
      %vm304 = vcmp.ge.f32.partialorder %v272, 0.0
      %vm305 = vcmp.ge.f32.partialorder %v273, 0.0
      %vm306 = vcmp.ge.f32.partialorder %v274, 0.0
      %v307 = vmul.f32 %v243, 0.1
      %v308 = vmul.f32 %v244, 0.1
      %v309 = vmul.f32 %v245, 0.1
      %v310 = vmul.f32 %v246, 0.1
      %v311 = vmul.f32 %v247, 0.1
      %v312 = vmul.f32 %v248, 0.1
      %v313 = vmul.f32 %v249, 0.1
      %v314 = vmul.f32 %v250, 0.1
      %v315 = vmul.f32 %v251, 0.1
      %v316 = vmul.f32 %v252, 0.1
      %v317 = vmul.f32 %v253, 0.1
      %v318 = vmul.f32 %v254, 0.1
      %v319 = vmul.f32 %v255, 0.1
      %v320 = vmul.f32 %v256, 0.1
      %v321 = vmul.f32 %v257, 0.1
      %v322 = vmul.f32 %v258, 0.1
      %v323 = vmul.f32 %v259, 0.1
      %v324 = vmul.f32 %v260, 0.1
      %v325 = vmul.f32 %v261, 0.1
      %v326 = vmul.f32 %v262, 0.1
      %v327 = vmul.f32 %v263, 0.1
      %v328 = vmul.f32 %v264, 0.1
      %v329 = vmul.f32 %v265, 0.1
      %v330 = vmul.f32 %v266, 0.1
      %v331 = vmul.f32 %v267, 0.1
      %v332 = vmul.f32 %v268, 0.1
      %v333 = vmul.f32 %v269, 0.1
      %v334 = vmul.f32 %v270, 0.1
      %v335 = vmul.f32 %v271, 0.1
      %v336 = vmul.f32 %v272, 0.1
      %v337 = vmul.f32 %v273, 0.1
      %v338 = vmul.f32 %v274, 0.1
      %v339 = vsel %vm275, %v243, %v307
      %v340 = vsel %vm276, %v244, %v308
      %v341 = vsel %vm277, %v245, %v309
      %v342 = vsel %vm278, %v246, %v310
      %v343 = vsel %vm279, %v247, %v311
      %v344 = vsel %vm280, %v248, %v312
      %v345 = vsel %vm281, %v249, %v313
      %v346 = vsel %vm282, %v250, %v314
      %v347 = vsel %vm283, %v251, %v315
      %v348 = vsel %vm284, %v252, %v316
      %v349 = vsel %vm285, %v253, %v317
      %v350 = vsel %vm286, %v254, %v318
      %v351 = vsel %vm287, %v255, %v319
      %v352 = vsel %vm288, %v256, %v320
      %v353 = vsel %vm289, %v257, %v321
      %v354 = vsel %vm290, %v258, %v322
      %v355 = vsel %vm291, %v259, %v323
      %v356 = vsel %vm292, %v260, %v324
      %v357 = vsel %vm293, %v261, %v325
      %v358 = vsel %vm294, %v262, %v326
      %v359 = vsel %vm295, %v263, %v327
      %v360 = vsel %vm296, %v264, %v328
      %v361 = vsel %vm297, %v265, %v329
      %v362 = vsel %vm298, %v266, %v330
      %v363 = vsel %vm299, %v267, %v331
      %v364 = vsel %vm300, %v268, %v332
      %v365 = vsel %vm301, %v269, %v333
      %v366 = vsel %vm302, %v270, %v334
      %v367 = vsel %vm303, %v271, %v335
      %v368 = vsel %vm304, %v272, %v336
      %v369 = vsel %vm305, %v273, %v337
      %v370 = vsel %vm306, %v274, %v338
      %vm371 = vcmask 31744
      %372 = vst.msk [vmem:[%s170] sm:$0xff] %vm371, %v339
      %373 = vst.msk [vmem:[%s170 + $0x8] sm:$0xff] %vm371, %v340
      %374 = vst.msk [vmem:[%s170 + $0x10] sm:$0xff] %vm371, %v341
      %375 = vst.msk [vmem:[%s170 + $0x18] sm:$0xff] %vm371, %v342
      %376 = vst.msk [vmem:[%s170 + $0x20] sm:$0xff] %vm371, %v343
      %377 = vst.msk [vmem:[%s170 + $0x28] sm:$0xff] %vm371, %v344
      %378 = vst.msk [vmem:[%s170 + $0x30] sm:$0xff] %vm371, %v345
      %379 = vst.msk [vmem:[%s170 + $0x38] sm:$0xff] %vm371, %v346
      %380 = vst.msk [vmem:[%s170 + $0x40] sm:$0xff] %vm371, %v347
      %381 = vst.msk [vmem:[%s170 + $0x48] sm:$0xff] %vm371, %v348
      %382 = vst.msk [vmem:[%s170 + $0x50] sm:$0xff] %vm371, %v349
      %383 = vst.msk [vmem:[%s170 + $0x58] sm:$0xff] %vm371, %v350
      %384 = vst.msk [vmem:[%s170 + $0x60] sm:$0xff] %vm371, %v351
      %385 = vst.msk [vmem:[%s170 + $0x68] sm:$0xff] %vm371, %v352
      %386 = vst.msk [vmem:[%s170 + $0x70] sm:$0xff] %vm371, %v353
      %387 = vst.msk [vmem:[%s170 + $0x78] sm:$0xff] %vm371, %v354
      %388 = vst.msk [vmem:[%s170 + $0x80] sm:$0xff] %vm371, %v355
      %389 = vst.msk [vmem:[%s170 + $0x88] sm:$0xff] %vm371, %v356
      %390 = vst.msk [vmem:[%s170 + $0x90] sm:$0xff] %vm371, %v357
      %391 = vst.msk [vmem:[%s170 + $0x98] sm:$0xff] %vm371, %v358
      %392 = vst.msk [vmem:[%s170 + $0xa0] sm:$0xff] %vm371, %v359
      %393 = vst.msk [vmem:[%s170 + $0xa8] sm:$0xff] %vm371, %v360
      %394 = vst.msk [vmem:[%s170 + $0xb0] sm:$0xff] %vm371, %v361
      %395 = vst.msk [vmem:[%s170 + $0xb8] sm:$0xff] %vm371, %v362
      %396 = vst.msk [vmem:[%s170 + $0xc0] sm:$0xff] %vm371, %v363
      %397 = vst.msk [vmem:[%s170 + $0xc8] sm:$0xff] %vm371, %v364
      %398 = vst.msk [vmem:[%s170 + $0xd0] sm:$0xff] %vm371, %v365
      %399 = vst.msk [vmem:[%s170 + $0xd8] sm:$0xff] %vm371, %v366
      %400 = vst.msk [vmem:[%s170 + $0xe0] sm:$0xff] %vm371, %v367
      %401 = vst.msk [vmem:[%s170 + $0xe8] sm:$0xff] %vm371, %v368
      %402 = vst.msk [vmem:[%s170 + $0xf0] sm:$0xff] %vm371, %v369
      %403 = vst.msk [vmem:[%s170 + $0xf8] sm:$0xff] %vm371, %v370
      %p404 = scmp.lt.s32.totalorder %s14, 1
      %s405 = scalar_select %p404, %s14, 1
      %s406 = smul.addr %s405, 32
      %s407 = smul.addr %s406, 8
      %s408 = scalar_lea.vmem %s3, %s407
      // Predicated region
      $region33: #{tpu_custom_call.1} parent=31 // pred_check
        %p409 = pneg %p100
      $region34: #{tpu_custom_call.1} parent=31 // pred_check_branch
        %411 = sbr.rel (%p409) target = $region36
      $region35: #{tpu_custom_call.1} parent=31 // pred_region
        _
      $region36: #{tpu_custom_call.1} parent=31 // pred_fallthru
        _
    $region32: #{tpu_custom_call.1} parent=5 // pred_fallthru
      _
    %p412 = scmp.le.s32.totalorder 2, %s9
    // Predicated region
    $region37: #{tpu_custom_call.1} parent=5 // pred_check
      %p413 = pneg %p412
    $region38: #{tpu_custom_call.1} parent=5 // pred_check_branch
      %415 = sbr.rel (%p413) target = $region40
    $region39: #{tpu_custom_call.1} parent=5 // pred_region
      %s416 = ssub.s32 %s9, 2
      // Predicated region
      $region41: #{tpu_custom_call.1} parent=39 // pred_check
        %p417 = pneg %p106
      $region42: #{tpu_custom_call.1} parent=39 // pred_check_branch
        %419 = sbr.rel (%p417) target = $region44
      $region43: #{tpu_custom_call.1} parent=39 // pred_region
        %p420 = scmp.lt.s32.totalorder %s15, 1
        %s421 = scalar_select %p420, %s15, 1
        %s422 = smul.addr %s421, 32
        %s423 = smul.addr %s422, 8
        %s424 = scalar_lea.vmem %s3, %s423
      $region44: #{tpu_custom_call.1} parent=39 // pred_fallthru
        _
    $region40: #{tpu_custom_call.1} parent=5 // pred_fallthru
      _
  $region6: #{tpu_custom_call.1} parent=0 // loop_footer
    %s13 = sadd.s32 1, %s9
  $region7: #{tpu_custom_call.1} parent=0 // loop_footer_branch
    %8 = sbr.rel target = $region3
  $region8: #{tpu_custom_call.1} parent=0 // loop_exit
    _

</llo_original>
